<compile_context>
chip_gen: v7x
topology: tpu7x:2x2x1
jax: 0.10.0
libtpu: 0.0.40
codegen_flags: <defaults>
</compile_context>

<pallas_src>
import jax
import jax.numpy as jnp
from jax.experimental import pallas as pl
from jax.experimental.pallas import tpu as pltpu


def disc_kernel(x_ref, w1_ref, b1_ref, w2_ref, b2_ref, w3_ref, b3_ref, o_ref):
    """One (channels, tn)-point tile of the per-point MLP.

    x_ref : (Cin, tn)      w*_ref : (Cout_l, Cin_l)      b*_ref : (Cout_l, 1)
    o_ref : (Cout, tn)
    """
    slope = jnp.float32(0.2)

    # Conv1d(Cin -> 64, k=1) + LeakyReLU
    h = jnp.dot(w1_ref[...], x_ref[...],
                preferred_element_type=jnp.float32) + b1_ref[...]
    h = jnp.maximum(h, slope * h)

    # Conv1d(64 -> 64, k=1) + LeakyReLU
    h = jnp.dot(w2_ref[...], h,
                preferred_element_type=jnp.float32) + b2_ref[...]
    h = jnp.maximum(h, slope * h)

    # Conv1d(64 -> Cout, k=1) + LeakyReLU
    h = jnp.dot(w3_ref[...], h,
                preferred_element_type=jnp.float32) + b3_ref[...]
    h = jnp.maximum(h, slope * h)

    o_ref[...] = h.astype(o_ref.dtype)   # lane-dense (Cout, tn) store


def base_disc_net(x, params, *, tn=512):
    """x: (B, Cin, N) float32.  Returns (B, Cout, N) float32."""
    B, Cin, N = x.shape
    w1, b1, w2, b2, w3, b3 = params
    Cout = w3.shape[0]

    # Channels-first flattening: points become the (fast) lane axis.
    M = B * N
    xc = jnp.moveaxis(x, 1, 0).reshape(Cin, M)          # (Cin, B*N)

    # Ragged point count: zero-pad to a multiple of the point tile.
    tn = max(128, (tn // 128) * 128)                     # keep tn a multiple of 128
    Mpad = ((M + tn - 1) // tn) * tn
    if Mpad != M:
        xc = jnp.pad(xc, ((0, 0), (0, Mpad - M)))

    out = pl.pallas_call(
        disc_kernel,
        out_shape=jax.ShapeDtypeStruct((Cout, Mpad), jnp.float32),
        grid_spec=pltpu.PrefetchScalarGridSpec(
            num_scalar_prefetch=0,
            grid=(Mpad // tn,),
            in_specs=[
                pl.BlockSpec((Cin, tn), lambda i: (0, i)),   # x point tile
                pl.BlockSpec(w1.shape, lambda i: (0, 0)),    # resident weights
                pl.BlockSpec(b1.shape, lambda i: (0, 0)),
                pl.BlockSpec(w2.shape, lambda i: (0, 0)),
                pl.BlockSpec(b2.shape, lambda i: (0, 0)),
                pl.BlockSpec(w3.shape, lambda i: (0, 0)),
                pl.BlockSpec(b3.shape, lambda i: (0, 0)),
            ],
            out_specs=pl.BlockSpec((Cout, tn), lambda i: (0, i)),
        ),
        compiler_params=pltpu.CompilerParams(
            dimension_semantics=("parallel",)),   # shards point tiles across TCs (v7x)
    )(xc, w1, b1, w2, b2, w3, b3)

    out = out[:, :M].reshape(Cout, B, N)                 # drop padding
    return jnp.moveaxis(out, 0, 1)                       # (B, Cout, N)


def init_params(key, input_dim, output_dim):
    """Deterministic init mimicking PyTorch's default uniform(-1/sqrt(fan_in)).

    Conv1d(k=1) weights (out, in, 1) are stored squeezed as (out, in); biases
    as (out, 1) column vectors (broadcast over the lane/point axis in-kernel).
    """
    ks = jax.random.split(key, 6)

    def u(k, shape, fan_in):
        bound = 1.0 / float(fan_in) ** 0.5
        return jax.random.uniform(k, shape, jnp.float32, -bound, bound)

    w1 = u(ks[0], (64, input_dim), input_dim)
    b1 = u(ks[1], (64, 1), input_dim)
    w2 = u(ks[2], (64, 64), 64)
    b2 = u(ks[3], (64, 1), 64)
    w3 = u(ks[4], (output_dim, 64), 64)
    b3 = u(ks[5], (output_dim, 1), 64)
    return (w1, b1, w2, b2, w3, b3)


def reference(x, params):
    """Pure-JAX reference matching BaseDiscNet.forward."""
    w1, b1, w2, b2, w3, b3 = params

    def lrelu(v):
        return jnp.maximum(v, 0.2 * v)

    h = lrelu(jnp.einsum('oi,bin->bon', w1, x,
                         precision=jax.lax.Precision.HIGHEST) + b1[None])
    h = lrelu(jnp.einsum('oi,bin->bon', w2, h,
                         precision=jax.lax.Precision.HIGHEST) + b2[None])
    h = lrelu(jnp.einsum('oi,bin->bon', w3, h,
                         precision=jax.lax.Precision.HIGHEST) + b3[None])
    return h


if __name__ == "__main__":
    key = jax.random.PRNGKey(0)
    kx, kp = jax.random.split(key)

    # Small shapes consistent with the module: x is (batch, input_dim, input_pts)
    B, input_dim, input_pts, output_dim = 2, 4, 16, 16
    x = jax.random.normal(kx, (B, input_dim, input_pts), jnp.float32)
    params = init_params(kp, input_dim, output_dim)

    out = base_disc_net(x, params)
    out = jax.block_until_ready(out)

    ref = reference(x, params)
    assert out.shape == (B, output_dim, input_pts), out.shape
    assert jnp.allclose(out, ref, atol=1e-5, rtol=1e-5), "mismatch vs reference"

    print("KERNEL_OK")
</pallas_src>

<mosaic_0001>
module attributes {stable_mosaic.version = 11 : i64} {
  func.func @disc_kernel(%arg0: i32, %arg1: memref<4x512xf32, #tpu.memory_space<vmem>>, %arg2: memref<64x4xf32, #tpu.memory_space<vmem>>, %arg3: memref<64x1xf32, #tpu.memory_space<vmem>>, %arg4: memref<64x64xf32, #tpu.memory_space<vmem>>, %arg5: memref<64x1xf32, #tpu.memory_space<vmem>>, %arg6: memref<16x64xf32, #tpu.memory_space<vmem>>, %arg7: memref<16x1xf32, #tpu.memory_space<vmem>>, %arg8: memref<16x512xf32, #tpu.memory_space<vmem>>) attributes {dimension_semantics = [#tpu.dimension_semantics<parallel>], iteration_bounds = array<i64: 1>, scalar_prefetch = 0 : i64, scratch_operands = 0 : i64, tpu.core_type = #tpu.core_type<tc>, window_params = [{transform_indices = @transform_0, window_bounds = array<i64: 4, 512>}, {pipeline_mode = #tpu.pipeline_mode<synchronous>, transform_indices = @transform_1, window_bounds = array<i64: 64, 4>}, {pipeline_mode = #tpu.pipeline_mode<synchronous>, transform_indices = @transform_2, window_bounds = array<i64: 64, 1>}, {pipeline_mode = #tpu.pipeline_mode<synchronous>, transform_indices = @transform_3, window_bounds = array<i64: 64, 64>}, {pipeline_mode = #tpu.pipeline_mode<synchronous>, transform_indices = @transform_4, window_bounds = array<i64: 64, 1>}, {pipeline_mode = #tpu.pipeline_mode<synchronous>, transform_indices = @transform_5, window_bounds = array<i64: 16, 64>}, {pipeline_mode = #tpu.pipeline_mode<synchronous>, transform_indices = @transform_6, window_bounds = array<i64: 16, 1>}, {transform_indices = @transform_7, window_bounds = array<i64: 16, 512>}]} {
    %c0 = arith.constant 0 : index
    %c0_0 = arith.constant 0 : index
    %0 = vector.load %arg2[%c0, %c0_0] : memref<64x4xf32, #tpu.memory_space<vmem>>, vector<64x4xf32>
    %c0_1 = arith.constant 0 : index
    %c0_2 = arith.constant 0 : index
    %1 = vector.load %arg1[%c0_1, %c0_2] : memref<4x512xf32, #tpu.memory_space<vmem>>, vector<4x512xf32>
    %cst = arith.constant dense<0.000000e+00> : vector<64x512xf32>
    %2 = tpu.matmul %0, %1, %cst {dimension_numbers = #tpu.dot_dimension_numbers<[1], [0], [0], [1], [0, 0, 1, 1], [], []>} : vector<64x4xf32>, vector<4x512xf32>, vector<64x512xf32> -> vector<64x512xf32>
    %c0_3 = arith.constant 0 : index
    %c0_4 = arith.constant 0 : index
    %3 = vector.load %arg3[%c0_3, %c0_4] : memref<64x1xf32, #tpu.memory_space<vmem>>, vector<64x1xf32>
    %4 = vector.broadcast %3 : vector<64x1xf32> to vector<64x512xf32>
    %5 = arith.addf %2, %4 : vector<64x512xf32>
    %cst_5 = arith.constant 2.000000e-01 : f32
    %6 = vector.broadcast %cst_5 : f32 to vector<64x512xf32>
    %7 = arith.mulf %6, %5 : vector<64x512xf32>
    %8 = arith.maximumf %5, %7 : vector<64x512xf32>
    %c0_6 = arith.constant 0 : index
    %c0_7 = arith.constant 0 : index
    %9 = vector.load %arg4[%c0_6, %c0_7] : memref<64x64xf32, #tpu.memory_space<vmem>>, vector<64x64xf32>
    %cst_8 = arith.constant dense<0.000000e+00> : vector<64x512xf32>
    %10 = tpu.matmul %9, %8, %cst_8 {dimension_numbers = #tpu.dot_dimension_numbers<[1], [0], [0], [1], [0, 0, 1, 1], [], []>} : vector<64x64xf32>, vector<64x512xf32>, vector<64x512xf32> -> vector<64x512xf32>
    %c0_9 = arith.constant 0 : index
    %c0_10 = arith.constant 0 : index
    %11 = vector.load %arg5[%c0_9, %c0_10] : memref<64x1xf32, #tpu.memory_space<vmem>>, vector<64x1xf32>
    %12 = vector.broadcast %11 : vector<64x1xf32> to vector<64x512xf32>
    %13 = arith.addf %10, %12 : vector<64x512xf32>
    %cst_11 = arith.constant 2.000000e-01 : f32
    %14 = vector.broadcast %cst_11 : f32 to vector<64x512xf32>
    %15 = arith.mulf %14, %13 : vector<64x512xf32>
    %16 = arith.maximumf %13, %15 : vector<64x512xf32>
    %c0_12 = arith.constant 0 : index
    %c0_13 = arith.constant 0 : index
    %17 = vector.load %arg6[%c0_12, %c0_13] : memref<16x64xf32, #tpu.memory_space<vmem>>, vector<16x64xf32>
    %cst_14 = arith.constant dense<0.000000e+00> : vector<16x512xf32>
    %18 = tpu.matmul %17, %16, %cst_14 {dimension_numbers = #tpu.dot_dimension_numbers<[1], [0], [0], [1], [0, 0, 1, 1], [], []>} : vector<16x64xf32>, vector<64x512xf32>, vector<16x512xf32> -> vector<16x512xf32>
    %c0_15 = arith.constant 0 : index
    %c0_16 = arith.constant 0 : index
    %19 = vector.load %arg7[%c0_15, %c0_16] : memref<16x1xf32, #tpu.memory_space<vmem>>, vector<16x1xf32>
    %20 = vector.broadcast %19 : vector<16x1xf32> to vector<16x512xf32>
    %21 = arith.addf %18, %20 : vector<16x512xf32>
    %cst_17 = arith.constant 2.000000e-01 : f32
    %22 = vector.broadcast %cst_17 : f32 to vector<16x512xf32>
    %23 = arith.mulf %22, %21 : vector<16x512xf32>
    %24 = arith.maximumf %21, %23 : vector<16x512xf32>
    %c0_18 = arith.constant 0 : index
    %c0_19 = arith.constant 0 : index
    %25 = vector.load %arg8[%c0_18, %c0_19] : memref<16x512xf32, #tpu.memory_space<vmem>>, vector<16x512xf32>
    tpu.vector_store %arg8[%c0_18, %c0_19], %24 {strides = array<i32>} : memref<16x512xf32, #tpu.memory_space<vmem>>, vector<16x512xf32>,
    return
  }
  func.func @transform_0(%arg0: i32) -> (i32, i32) {
    %c0_i32 = arith.constant 0 : i32
    %c0_i32_0 = arith.constant 0 : i32
    return %c0_i32, %arg0 : i32, i32
  }
  func.func @transform_1(%arg0: i32) -> (i32, i32) {
    %c0_i32 = arith.constant 0 : i32
    %c0_i32_0 = arith.constant 0 : i32
    %c0_i32_1 = arith.constant 0 : i32
    return %c0_i32, %c0_i32_0 : i32, i32
  }
  func.func @transform_2(%arg0: i32) -> (i32, i32) {
    %c0_i32 = arith.constant 0 : i32
    %c0_i32_0 = arith.constant 0 : i32
    %c0_i32_1 = arith.constant 0 : i32
    return %c0_i32, %c0_i32_0 : i32, i32
  }
  func.func @transform_3(%arg0: i32) -> (i32, i32) {
    %c0_i32 = arith.constant 0 : i32
    %c0_i32_0 = arith.constant 0 : i32
    %c0_i32_1 = arith.constant 0 : i32
    return %c0_i32, %c0_i32_0 : i32, i32
  }
  func.func @transform_4(%arg0: i32) -> (i32, i32) {
    %c0_i32 = arith.constant 0 : i32
    %c0_i32_0 = arith.constant 0 : i32
    %c0_i32_1 = arith.constant 0 : i32
    return %c0_i32, %c0_i32_0 : i32, i32
  }
  func.func @transform_5(%arg0: i32) -> (i32, i32) {
    %c0_i32 = arith.constant 0 : i32
    %c0_i32_0 = arith.constant 0 : i32
    %c0_i32_1 = arith.constant 0 : i32
    return %c0_i32, %c0_i32_0 : i32, i32
  }
  func.func @transform_6(%arg0: i32) -> (i32, i32) {
    %c0_i32 = arith.constant 0 : i32
    %c0_i32_0 = arith.constant 0 : i32
    %c0_i32_1 = arith.constant 0 : i32
    return %c0_i32, %c0_i32_0 : i32, i32
  }
  func.func @transform_7(%arg0: i32) -> (i32, i32) {
    %c0_i32 = arith.constant 0 : i32
    %c0_i32_0 = arith.constant 0 : i32
    return %c0_i32, %arg0 : i32, i32
  }
}

</mosaic_0001>

<llo_original>
// kernel: tpu_custom_call.1
$region0: #{tpu_custom_call.1}
  #allocation0 [shape = 'u32[]', space=smem, size = 0x4, offset = 0x4, fixed_abs, tag = 'smem constant byte address 0x4 - core index']
  #allocation1 [shape = 'u32[144,128]{1,0:T(1,128)}', space=vmem, size = 0x12000, scoped, tag = 'internal scratch']
  %s0 = inlined_call_operand.vmem [shape: f32[4,512], index: 0, kind: input, shape index: {}]
  %s1 = inlined_call_operand.vmem [shape: f32[64,4], index: 1, kind: input, shape index: {}]
  %s2 = inlined_call_operand.vmem [shape: f32[64,1], index: 2, kind: input, shape index: {}]
  %s3 = inlined_call_operand.vmem [shape: f32[64,64], index: 3, kind: input, shape index: {}]
  %s4 = inlined_call_operand.vmem [shape: f32[64,1], index: 4, kind: input, shape index: {}]
  %s5 = inlined_call_operand.vmem [shape: f32[16,64], index: 5, kind: input, shape index: {}]
  %s6 = inlined_call_operand.vmem [shape: f32[16,1], index: 6, kind: input, shape index: {}]
  %s7 = inlined_call_operand.hbm [shape: f32[16,512], index: 7, kind: output, shape index: {}]
  %s8 = sld [smem:[#allocation0]]
  $region38: #{tpu_custom_call.1} parent=0
    _
  %s10 = ssub.s32 1, %s8
  %s11 = scalar_select 0, %s10, %s8
  $region1: #{tpu_custom_call.1} parent=0
    #allocation2 [shape = 'u8[32768]{0}', space=vmem, size = 0x8000, scoped, tag = 'output window, operand 0, single buffered']
    #allocation3 [shape = 's32[1]{0}', space=sflag, size = 0x4, scoped, tag = 'scoped memory for tpu_custom_call.1']
    %12 = vsyncpa [#allocation3], 0
    // Predicated region
    $region2: #{tpu_custom_call.1} parent=1 // pred_check
      _
    $region3: #{tpu_custom_call.1} parent=1 // pred_check_branch
      %14 = sbr.rel (0) target = $region5
    $region4: #{tpu_custom_call.1} parent=1 // pred_region
      _
    $region5: #{tpu_custom_call.1} parent=1 // pred_fallthru
      _
    // Predicated region
    $region6: #{tpu_custom_call.1} parent=1 // pred_check
      _
    $region7: #{tpu_custom_call.1} parent=1 // pred_check_branch
      %16 = sbr.rel (0) target = $region9
    $region8: #{tpu_custom_call.1} parent=1 // pred_region
      _
    $region9: #{tpu_custom_call.1} parent=1 // pred_fallthru
      _
    // Predicated region
    $region10: #{tpu_custom_call.1} parent=1 // pred_check
      _
    $region11: #{tpu_custom_call.1} parent=1 // pred_check_branch
      %18 = sbr.rel (0) target = $region13
    $region12: #{tpu_custom_call.1} parent=1 // pred_region
      _
    $region13: #{tpu_custom_call.1} parent=1 // pred_fallthru
      _
    // Predicated region
    $region14: #{tpu_custom_call.1} parent=1 // pred_check
      _
    $region15: #{tpu_custom_call.1} parent=1 // pred_check_branch
      %20 = sbr.rel (0) target = $region17
    $region16: #{tpu_custom_call.1} parent=1 // pred_region
      _
    $region17: #{tpu_custom_call.1} parent=1 // pred_fallthru
      _
    // Predicated region
    $region18: #{tpu_custom_call.1} parent=1 // pred_check
      _
    $region19: #{tpu_custom_call.1} parent=1 // pred_check_branch
      %22 = sbr.rel (0) target = $region21
    $region20: #{tpu_custom_call.1} parent=1 // pred_region
      _
    $region21: #{tpu_custom_call.1} parent=1 // pred_fallthru
      _
    // Predicated region
    $region22: #{tpu_custom_call.1} parent=1 // pred_check
      _
    $region23: #{tpu_custom_call.1} parent=1 // pred_check_branch
      %24 = sbr.rel (0) target = $region25
    $region24: #{tpu_custom_call.1} parent=1 // pred_region
      _
    $region25: #{tpu_custom_call.1} parent=1 // pred_fallthru
      _
    // Predicated region
    $region26: #{tpu_custom_call.1} parent=1 // pred_check
      _
    $region27: #{tpu_custom_call.1} parent=1 // pred_check_branch
      %26 = sbr.rel (0) target = $region29
    $region28: #{tpu_custom_call.1} parent=1 // pred_region
      _
    $region29: #{tpu_custom_call.1} parent=1 // pred_fallthru
      _
    %v27 = vld [vmem:[%s1] sm:$0xff]
    %v28 = vld [vmem:[%s1 + $0x8] sm:$0xff]
    %v29 = vld [vmem:[%s1 + $0x10] sm:$0xff]
    %v30 = vld [vmem:[%s1 + $0x18] sm:$0xff]
    %v31 = vld [vmem:[%s1 + $0x20] sm:$0xff]
    %v32 = vld [vmem:[%s1 + $0x28] sm:$0xff]
    %v33 = vld [vmem:[%s1 + $0x30] sm:$0xff]
    %v34 = vld [vmem:[%s1 + $0x38] sm:$0xff]
    %v35 = vld [vmem:[%s0] sm:$0xff]
    %v36 = vld [vmem:[%s0 + $0x8] sm:$0xff]
    %v37 = vld [vmem:[%s2] sm:$0xff]
    %v38 = vld [vmem:[%s2 + $0x8] sm:$0xff]
    %v39 = vld [vmem:[%s2 + $0x10] sm:$0xff]
    %v40 = vld [vmem:[%s2 + $0x18] sm:$0xff]
    %v41 = vld [vmem:[%s2 + $0x20] sm:$0xff]
    %v42 = vld [vmem:[%s2 + $0x28] sm:$0xff]
    %v43 = vld [vmem:[%s2 + $0x30] sm:$0xff]
    %v44 = vld [vmem:[%s2 + $0x38] sm:$0xff]
    %46 = vset.pattern.permute.xlu0 0
    %47 = vperm.xlu0 %46, %v37
    %v48 = vpop.permute.xlu0 %47
    %51 = vset.pattern.permute.xlu0 0
    %52 = vperm.xlu0 %51, %v38
    %v53 = vpop.permute.xlu0 %52
    %56 = vset.pattern.permute.xlu0 0
    %57 = vperm.xlu0 %56, %v39
    %v58 = vpop.permute.xlu0 %57
    %61 = vset.pattern.permute.xlu0 0
    %62 = vperm.xlu0 %61, %v40
    %v63 = vpop.permute.xlu0 %62
    %66 = vset.pattern.permute.xlu0 0
    %67 = vperm.xlu0 %66, %v41
    %v68 = vpop.permute.xlu0 %67
    %71 = vset.pattern.permute.xlu0 0
    %72 = vperm.xlu0 %71, %v42
    %v73 = vpop.permute.xlu0 %72
    %76 = vset.pattern.permute.xlu0 0
    %77 = vperm.xlu0 %76, %v43
    %v78 = vpop.permute.xlu0 %77
    %81 = vset.pattern.permute.xlu0 0
    %82 = vperm.xlu0 %81, %v44
    %v83 = vpop.permute.xlu0 %82
    %v87 = vcombine.high %v35, %v35
    %v88 = vcombine.high %v36, %v36
    %vm89 = vcmask 31744
    %v91 = vsel %vm89, %v27, 0
    %v94 = vsel %vm89, %v28, 0
    %v97 = vsel %vm89, %v29, 0
    %v100 = vsel %vm89, %v30, 0
    %v103 = vsel %vm89, %v31, 0
    %v106 = vsel %vm89, %v32, 0
    %v109 = vsel %vm89, %v33, 0
    %v112 = vsel %vm89, %v34, 0
    %vm114 = vcmask 1043456
    %v115 = vsel %vm114, %v35, 0
    %v117 = vsel %vm114, %v87, 0
    %v119 = vsel %vm114, %v36, 0
    %v121 = vsel %vm114, %v88, 0
    %123 = vmatprep.subr.mxu0 %v117
    %124 = vmatpush1.msra.mxu0 %v115
    %125 = vmatprep.subr.mxu0 0.0
    %126 = vmatpush1.msra.mxu0 0.0
    %127 = vmatprep.subr.mxu0 0.0
    %128 = vmatpush1.msra.mxu0 0.0
    %129 = vmatprep.subr.mxu0 0.0
    %130 = vmatpush1.msra.mxu0 0.0
    %131 = vmatprep.subr.mxu0 0.0
    %132 = vmatpush1.msra.mxu0 0.0
    %133 = vmatprep.subr.mxu0 0.0
    %134 = vmatpush1.msra.mxu0 0.0
    %135 = vmatprep.subr.mxu0 0.0
    %136 = vmatpush1.msra.mxu0 0.0
    %137 = vmatprep.subr.mxu0 0.0
    %138 = vmatpush1.msra.mxu0 0.0
    %139 = vmatprep.subr.mxu0 0.0
    %140 = vmatpush1.msra.mxu0 0.0
    %141 = vmatprep.subr.mxu0 0.0
    %142 = vmatpush1.msra.mxu0 0.0
    %143 = vmatprep.subr.mxu0 0.0
    %144 = vmatpush1.msra.mxu0 0.0
    %145 = vmatprep.subr.mxu0 0.0
    %146 = vmatpush1.msra.mxu0 0.0
    %147 = vmatprep.subr.mxu0 0.0
    %148 = vmatpush1.msra.mxu0 0.0
    %149 = vmatprep.subr.mxu0 0.0
    %150 = vmatpush1.msra.mxu0 0.0
    %151 = vmatprep.subr.mxu0 0.0
    %152 = vmatpush1.msra.mxu0 0.0
    %153 = vmatprep.subr.mxu0 0.0
    %154 = vmatpush1.msra.mxu0 0.0
    %155 = vmatprep.subr.mxu0 0.0
    %156 = vmatpush1.msra.mxu0 0.0
    %157 = vmatprep.subr.mxu0 0.0
    %158 = vmatpush1.msra.mxu0 0.0
    %159 = vmatprep.subr.mxu0 0.0
    %160 = vmatpush1.msra.mxu0 0.0
    %161 = vmatprep.subr.mxu0 0.0
    %162 = vmatpush1.msra.mxu0 0.0
    %163 = vmatprep.subr.mxu0 0.0
    %164 = vmatpush1.msra.mxu0 0.0
    %165 = vmatprep.subr.mxu0 0.0
    %166 = vmatpush1.msra.mxu0 0.0
    %167 = vmatprep.subr.mxu0 0.0
    %168 = vmatpush1.msra.mxu0 0.0
    %169 = vmatprep.subr.mxu0 0.0
    %170 = vmatpush1.msra.mxu0 0.0
    %171 = vmatprep.subr.mxu0 0.0
    %172 = vmatpush1.msra.mxu0 0.0
    %173 = vmatprep.subr.mxu0 0.0
    %174 = vmatpush1.msra.mxu0 0.0
    %175 = vmatprep.subr.mxu0 0.0
    %176 = vmatpush1.msra.mxu0 0.0
    %177 = vmatprep.subr.mxu0 0.0
    %178 = vmatpush1.msra.mxu0 0.0
    %179 = vmatprep.subr.mxu0 0.0
    %180 = vmatpush1.msra.mxu0 0.0
    %181 = vmatprep.subr.mxu0 0.0
    %182 = vmatpush1.msra.mxu0 0.0
    %183 = vmatprep.subr.mxu0 0.0
    %184 = vmatpush1.msra.mxu0 0.0
    %185 = vmatprep.subr.mxu0 0.0
    %186 = vmatpush1.msra.mxu0 0.0
    %187 = vmatprep.mubr.f32.mxu0 0.0
    %188 = vmatmul.mubr.f32.gmra.mrb[0].mxu0 %v91
    %v189 = vpop.f32.mrb[0].mxu0
    %v190 = vadd.f32 %v48, %v189
    %v191 = vpop.f32.mrb[0].mxu0
    %v192 = vadd.f32 %v48, %v191
    %193 = vmatprep.mubr.f32.mxu0 0.0
    %194 = vmatmul.mubr.f32.gmra.mrb[0].mxu0 %v94
    %v195 = vpop.f32.mrb[0].mxu0
    %v196 = vadd.f32 %v53, %v195
    %v197 = vpop.f32.mrb[0].mxu0
    %v198 = vadd.f32 %v53, %v197
    %199 = vmatprep.mubr.f32.mxu0 0.0
    %200 = vmatmul.mubr.f32.gmra.mrb[0].mxu0 %v97
    %v201 = vpop.f32.mrb[0].mxu0
    %v202 = vadd.f32 %v58, %v201
    %v203 = vpop.f32.mrb[0].mxu0
    %v204 = vadd.f32 %v58, %v203
    %205 = vmatprep.mubr.f32.mxu0 0.0
    %206 = vmatmul.mubr.f32.gmra.mrb[0].mxu0 %v100
    %v207 = vpop.f32.mrb[0].mxu0
    %v208 = vadd.f32 %v63, %v207
    %v209 = vpop.f32.mrb[0].mxu0
    %v210 = vadd.f32 %v63, %v209
    %211 = vmatprep.mubr.f32.mxu0 0.0
    %212 = vmatmul.mubr.f32.gmra.mrb[0].mxu0 %v103
    %v213 = vpop.f32.mrb[0].mxu0
    %v214 = vadd.f32 %v68, %v213
    %v215 = vpop.f32.mrb[0].mxu0
    %v216 = vadd.f32 %v68, %v215
    %217 = vmatprep.mubr.f32.mxu0 0.0
    %218 = vmatmul.mubr.f32.gmra.mrb[0].mxu0 %v106
    %v219 = vpop.f32.mrb[0].mxu0
    %v220 = vadd.f32 %v73, %v219
    %v221 = vpop.f32.mrb[0].mxu0
    %v222 = vadd.f32 %v73, %v221
    %223 = vmatprep.mubr.f32.mxu0 0.0
    %224 = vmatmul.mubr.f32.gmra.mrb[0].mxu0 %v109
    %v225 = vpop.f32.mrb[0].mxu0
    %v226 = vadd.f32 %v78, %v225
    %v227 = vpop.f32.mrb[0].mxu0
    %v228 = vadd.f32 %v78, %v227
    %229 = vmatprep.mubr.f32.mxu0 0.0
    %230 = vmatmul.mubr.f32.gmra.mrb[0].mxu0 %v112
    %v231 = vpop.f32.mrb[0].mxu0
    %v232 = vadd.f32 %v83, %v231
    %v233 = vpop.f32.mrb[0].mxu0
    %v234 = vadd.f32 %v83, %v233
    %235 = vdwg.mxu0
    %236 = vmatprep.subr.mxu0 %v121
    %237 = vmatpush1.msra.mxu0 %v119
    %238 = vmatprep.subr.mxu0 0.0
    %239 = vmatpush1.msra.mxu0 0.0
    %240 = vmatprep.subr.mxu0 0.0
    %241 = vmatpush1.msra.mxu0 0.0
    %242 = vmatprep.subr.mxu0 0.0
    %243 = vmatpush1.msra.mxu0 0.0
    %244 = vmatprep.subr.mxu0 0.0
    %245 = vmatpush1.msra.mxu0 0.0
    %246 = vmatprep.subr.mxu0 0.0
    %247 = vmatpush1.msra.mxu0 0.0
    %248 = vmatprep.subr.mxu0 0.0
    %249 = vmatpush1.msra.mxu0 0.0
    %250 = vmatprep.subr.mxu0 0.0
    %251 = vmatpush1.msra.mxu0 0.0
    %252 = vmatprep.subr.mxu0 0.0
    %253 = vmatpush1.msra.mxu0 0.0
    %254 = vmatprep.subr.mxu0 0.0
    %255 = vmatpush1.msra.mxu0 0.0
    %256 = vmatprep.subr.mxu0 0.0
    %257 = vmatpush1.msra.mxu0 0.0
    %258 = vmatprep.subr.mxu0 0.0
    %259 = vmatpush1.msra.mxu0 0.0
    %260 = vmatprep.subr.mxu0 0.0
    %261 = vmatpush1.msra.mxu0 0.0
    %262 = vmatprep.subr.mxu0 0.0
    %263 = vmatpush1.msra.mxu0 0.0
    %264 = vmatprep.subr.mxu0 0.0
    %265 = vmatpush1.msra.mxu0 0.0
    %266 = vmatprep.subr.mxu0 0.0
    %267 = vmatpush1.msra.mxu0 0.0
    %268 = vmatprep.subr.mxu0 0.0
    %269 = vmatpush1.msra.mxu0 0.0
    %270 = vmatprep.subr.mxu0 0.0
    %271 = vmatpush1.msra.mxu0 0.0
    %272 = vmatprep.subr.mxu0 0.0
    %273 = vmatpush1.msra.mxu0 0.0
    %274 = vmatprep.subr.mxu0 0.0
    %275 = vmatpush1.msra.mxu0 0.0
    %276 = vmatprep.subr.mxu0 0.0
    %277 = vmatpush1.msra.mxu0 0.0
    %278 = vmatprep.subr.mxu0 0.0
    %279 = vmatpush1.msra.mxu0 0.0
    %280 = vmatprep.subr.mxu0 0.0
    %281 = vmatpush1.msra.mxu0 0.0
    %282 = vmatprep.subr.mxu0 0.0
    %283 = vmatpush1.msra.mxu0 0.0
    %284 = vmatprep.subr.mxu0 0.0
    %285 = vmatpush1.msra.mxu0 0.0
    %286 = vmatprep.subr.mxu0 0.0
    %287 = vmatpush1.msra.mxu0 0.0
    %288 = vmatprep.subr.mxu0 0.0
    %289 = vmatpush1.msra.mxu0 0.0
    %290 = vmatprep.subr.mxu0 0.0
    %291 = vmatpush1.msra.mxu0 0.0
    %292 = vmatprep.subr.mxu0 0.0
    %293 = vmatpush1.msra.mxu0 0.0
    %294 = vmatprep.subr.mxu0 0.0
    %295 = vmatpush1.msra.mxu0 0.0
    %296 = vmatprep.subr.mxu0 0.0
    %297 = vmatpush1.msra.mxu0 0.0
    %298 = vmatprep.subr.mxu0 0.0
    %299 = vmatpush1.msra.mxu0 0.0
    %300 = vmatprep.mubr.f32.mxu0 0.0
    %301 = vmatmul.mubr.f32.gmra.mrb[0].mxu0 %v91
    %v302 = vpop.f32.mrb[0].mxu0
    %v303 = vadd.f32 %v48, %v302
    %v304 = vpop.f32.mrb[0].mxu0
    %v305 = vadd.f32 %v48, %v304
    %306 = vmatprep.mubr.f32.mxu0 0.0
    %307 = vmatmul.mubr.f32.gmra.mrb[0].mxu0 %v94
    %v308 = vpop.f32.mrb[0].mxu0
    %v309 = vadd.f32 %v53, %v308
    %v310 = vpop.f32.mrb[0].mxu0
    %v311 = vadd.f32 %v53, %v310
    %312 = vmatprep.mubr.f32.mxu0 0.0
    %313 = vmatmul.mubr.f32.gmra.mrb[0].mxu0 %v97
    %v314 = vpop.f32.mrb[0].mxu0
    %v315 = vadd.f32 %v58, %v314
    %v316 = vpop.f32.mrb[0].mxu0
    %v317 = vadd.f32 %v58, %v316
    %318 = vmatprep.mubr.f32.mxu0 0.0
    %319 = vmatmul.mubr.f32.gmra.mrb[0].mxu0 %v100
    %v320 = vpop.f32.mrb[0].mxu0
    %v321 = vadd.f32 %v63, %v320
    %v322 = vpop.f32.mrb[0].mxu0
    %v323 = vadd.f32 %v63, %v322
    %324 = vmatprep.mubr.f32.mxu0 0.0
    %325 = vmatmul.mubr.f32.gmra.mrb[0].mxu0 %v103
    %v326 = vpop.f32.mrb[0].mxu0
    %v327 = vadd.f32 %v68, %v326
    %v328 = vpop.f32.mrb[0].mxu0
    %v329 = vadd.f32 %v68, %v328
    %330 = vmatprep.mubr.f32.mxu0 0.0
    %331 = vmatmul.mubr.f32.gmra.mrb[0].mxu0 %v106
    %v332 = vpop.f32.mrb[0].mxu0
    %v333 = vadd.f32 %v73, %v332
    %v334 = vpop.f32.mrb[0].mxu0
    %v335 = vadd.f32 %v73, %v334
    %336 = vmatprep.mubr.f32.mxu0 0.0
    %337 = vmatmul.mubr.f32.gmra.mrb[0].mxu0 %v109
    %v338 = vpop.f32.mrb[0].mxu0
    %v339 = vadd.f32 %v78, %v338
    %v340 = vpop.f32.mrb[0].mxu0
    %v341 = vadd.f32 %v78, %v340
    %342 = vmatprep.mubr.f32.mxu0 0.0
    %343 = vmatmul.mubr.f32.gmra.mrb[0].mxu0 %v112
    %v344 = vpop.f32.mrb[0].mxu0
    %v345 = vadd.f32 %v83, %v344
    %v346 = vpop.f32.mrb[0].mxu0
    %v347 = vadd.f32 %v83, %v346
    %348 = vdwg.mxu0
    %v349 = vmul.f32 %v190, 0.2
    %v350 = vmul.f32 %v192, 0.2
    %v351 = vmul.f32 %v303, 0.2
    %v352 = vmul.f32 %v305, 0.2
    %v353 = vmul.f32 %v196, 0.2
    %v354 = vmul.f32 %v198, 0.2
    %v355 = vmul.f32 %v309, 0.2
    %v356 = vmul.f32 %v311, 0.2
    %v357 = vmul.f32 %v202, 0.2
    %v358 = vmul.f32 %v204, 0.2
    %v359 = vmul.f32 %v315, 0.2
    %v360 = vmul.f32 %v317, 0.2
    %v361 = vmul.f32 %v208, 0.2
    %v362 = vmul.f32 %v210, 0.2
    %v363 = vmul.f32 %v321, 0.2
    %v364 = vmul.f32 %v323, 0.2
    %v365 = vmul.f32 %v214, 0.2
    %v366 = vmul.f32 %v216, 0.2
    %v367 = vmul.f32 %v327, 0.2
    %v368 = vmul.f32 %v329, 0.2
    %v369 = vmul.f32 %v220, 0.2
    %v370 = vmul.f32 %v222, 0.2
    %v371 = vmul.f32 %v333, 0.2
    %v372 = vmul.f32 %v335, 0.2
    %v373 = vmul.f32 %v226, 0.2
    %v374 = vmul.f32 %v228, 0.2
    %v375 = vmul.f32 %v339, 0.2
    %v376 = vmul.f32 %v341, 0.2
    %v377 = vmul.f32 %v232, 0.2
    %v378 = vmul.f32 %v234, 0.2
    %v379 = vmul.f32 %v345, 0.2
    %v380 = vmul.f32 %v347, 0.2
    %v381 = vmax.f32 %v190, %v349
    %v382 = vmax.f32 %v192, %v350
    %v383 = vmax.f32 %v303, %v351
    %v384 = vmax.f32 %v305, %v352
    %v385 = vmax.f32 %v196, %v353
    %v386 = vmax.f32 %v198, %v354
    %v387 = vmax.f32 %v309, %v355
    %v388 = vmax.f32 %v311, %v356
    %v389 = vmax.f32 %v202, %v357
    %v390 = vmax.f32 %v204, %v358
    %v391 = vmax.f32 %v315, %v359
    %v392 = vmax.f32 %v317, %v360
    %v393 = vmax.f32 %v208, %v361
    %v394 = vmax.f32 %v210, %v362
    %v395 = vmax.f32 %v321, %v363
    %v396 = vmax.f32 %v323, %v364
    %v397 = vmax.f32 %v214, %v365
    %v398 = vmax.f32 %v216, %v366
    %v399 = vmax.f32 %v327, %v367
    %v400 = vmax.f32 %v329, %v368
    %v401 = vmax.f32 %v220, %v369
    %v402 = vmax.f32 %v222, %v370
    %v403 = vmax.f32 %v333, %v371
    %v404 = vmax.f32 %v335, %v372
    %v405 = vmax.f32 %v226, %v373
    %v406 = vmax.f32 %v228, %v374
    %v407 = vmax.f32 %v339, %v375
    %v408 = vmax.f32 %v341, %v376
    %v409 = vmax.f32 %v232, %v377
    %v410 = vmax.f32 %v234, %v378
    %v411 = vmax.f32 %v345, %v379
    %v412 = vmax.f32 %v347, %v380
    %v413 = vld [vmem:[%s3] sm:$0xff]
    %v414 = vld [vmem:[%s3 + $0x8] sm:$0xff]
    %v415 = vld [vmem:[%s3 + $0x10] sm:$0xff]
    %v416 = vld [vmem:[%s3 + $0x18] sm:$0xff]
    %v417 = vld [vmem:[%s3 + $0x20] sm:$0xff]
    %v418 = vld [vmem:[%s3 + $0x28] sm:$0xff]
    %v419 = vld [vmem:[%s3 + $0x30] sm:$0xff]
    %v420 = vld [vmem:[%s3 + $0x38] sm:$0xff]
    %v421 = vld [vmem:[%s4] sm:$0xff]
    %v422 = vld [vmem:[%s4 + $0x8] sm:$0xff]
    %v423 = vld [vmem:[%s4 + $0x10] sm:$0xff]
    %v424 = vld [vmem:[%s4 + $0x18] sm:$0xff]
    %v425 = vld [vmem:[%s4 + $0x20] sm:$0xff]
    %v426 = vld [vmem:[%s4 + $0x28] sm:$0xff]
    %v427 = vld [vmem:[%s4 + $0x30] sm:$0xff]
    %v428 = vld [vmem:[%s4 + $0x38] sm:$0xff]
    %430 = vset.pattern.permute.xlu0 0
    %431 = vperm.xlu0 %430, %v421
    %v432 = vpop.permute.xlu0 %431
    %435 = vset.pattern.permute.xlu0 0
    %436 = vperm.xlu0 %435, %v422
    %v437 = vpop.permute.xlu0 %436
    %440 = vset.pattern.permute.xlu0 0
    %441 = vperm.xlu0 %440, %v423
    %v442 = vpop.permute.xlu0 %441
    %445 = vset.pattern.permute.xlu0 0
    %446 = vperm.xlu0 %445, %v424
    %v447 = vpop.permute.xlu0 %446
    %450 = vset.pattern.permute.xlu0 0
    %451 = vperm.xlu0 %450, %v425
    %v452 = vpop.permute.xlu0 %451
    %455 = vset.pattern.permute.xlu0 0
    %456 = vperm.xlu0 %455, %v426
    %v457 = vpop.permute.xlu0 %456
    %460 = vset.pattern.permute.xlu0 0
    %461 = vperm.xlu0 %460, %v427
    %v462 = vpop.permute.xlu0 %461
    %465 = vset.pattern.permute.xlu0 0
    %466 = vperm.xlu0 %465, %v428
    %v467 = vpop.permute.xlu0 %466
    %vm469 = vcmask 523264
    %v471 = vsel %vm469, %v413, 0
    %v474 = vsel %vm469, %v414, 0
    %v477 = vsel %vm469, %v415, 0
    %v480 = vsel %vm469, %v416, 0
    %v483 = vsel %vm469, %v417, 0
    %v486 = vsel %vm469, %v418, 0
    %v489 = vsel %vm469, %v419, 0
    %v492 = vsel %vm469, %v420, 0
    %494 = vmatprep.subr.mxu0 %v382
    %495 = vmatpush1.msra.mxu0 %v381
    %496 = vmatprep.subr.mxu0 %v386
    %497 = vmatpush1.msra.mxu0 %v385
    %498 = vmatprep.subr.mxu0 %v390
    %499 = vmatpush1.msra.mxu0 %v389
    %500 = vmatprep.subr.mxu0 %v394
    %501 = vmatpush1.msra.mxu0 %v393
    %502 = vmatprep.subr.mxu0 %v398
    %503 = vmatpush1.msra.mxu0 %v397
    %504 = vmatprep.subr.mxu0 %v402
    %505 = vmatpush1.msra.mxu0 %v401
    %506 = vmatprep.subr.mxu0 %v406
    %507 = vmatpush1.msra.mxu0 %v405
    %508 = vmatprep.subr.mxu0 %v410
    %509 = vmatpush1.msra.mxu0 %v409
    %510 = vmatprep.subr.mxu0 0.0
    %511 = vmatpush1.msra.mxu0 0.0
    %512 = vmatprep.subr.mxu0 0.0
    %513 = vmatpush1.msra.mxu0 0.0
    %514 = vmatprep.subr.mxu0 0.0
    %515 = vmatpush1.msra.mxu0 0.0
    %516 = vmatprep.subr.mxu0 0.0
    %517 = vmatpush1.msra.mxu0 0.0
    %518 = vmatprep.subr.mxu0 0.0
    %519 = vmatpush1.msra.mxu0 0.0
    %520 = vmatprep.subr.mxu0 0.0
    %521 = vmatpush1.msra.mxu0 0.0
    %522 = vmatprep.subr.mxu0 0.0
    %523 = vmatpush1.msra.mxu0 0.0
    %524 = vmatprep.subr.mxu0 0.0
    %525 = vmatpush1.msra.mxu0 0.0
    %526 = vmatprep.subr.mxu0 0.0
    %527 = vmatpush1.msra.mxu0 0.0
    %528 = vmatprep.subr.mxu0 0.0
    %529 = vmatpush1.msra.mxu0 0.0
    %530 = vmatprep.subr.mxu0 0.0
    %531 = vmatpush1.msra.mxu0 0.0
    %532 = vmatprep.subr.mxu0 0.0
    %533 = vmatpush1.msra.mxu0 0.0
    %534 = vmatprep.subr.mxu0 0.0
    %535 = vmatpush1.msra.mxu0 0.0
    %536 = vmatprep.subr.mxu0 0.0
    %537 = vmatpush1.msra.mxu0 0.0
    %538 = vmatprep.subr.mxu0 0.0
    %539 = vmatpush1.msra.mxu0 0.0
    %540 = vmatprep.subr.mxu0 0.0
    %541 = vmatpush1.msra.mxu0 0.0
    %542 = vmatprep.subr.mxu0 0.0
    %543 = vmatpush1.msra.mxu0 0.0
    %544 = vmatprep.subr.mxu0 0.0
    %545 = vmatpush1.msra.mxu0 0.0
    %546 = vmatprep.subr.mxu0 0.0
    %547 = vmatpush1.msra.mxu0 0.0
    %548 = vmatprep.subr.mxu0 0.0
    %549 = vmatpush1.msra.mxu0 0.0
    %550 = vmatprep.subr.mxu0 0.0
    %551 = vmatpush1.msra.mxu0 0.0
    %552 = vmatprep.subr.mxu0 0.0
    %553 = vmatpush1.msra.mxu0 0.0
    %554 = vmatprep.subr.mxu0 0.0
    %555 = vmatpush1.msra.mxu0 0.0
    %556 = vmatprep.subr.mxu0 0.0
    %557 = vmatpush1.msra.mxu0 0.0
    %558 = vmatprep.mubr.f32.mxu0 0.0
    %559 = vmatmul.mubr.f32.gmra.mrb[0].mxu0 %v471
    %v560 = vpop.f32.mrb[0].mxu0
    %v561 = vadd.f32 %v432, %v560
    %v562 = vpop.f32.mrb[0].mxu0
    %v563 = vadd.f32 %v432, %v562
    %564 = vmatprep.mubr.f32.mxu0 0.0
    %565 = vmatmul.mubr.f32.gmra.mrb[0].mxu0 %v474
    %v566 = vpop.f32.mrb[0].mxu0
    %v567 = vadd.f32 %v437, %v566
    %v568 = vpop.f32.mrb[0].mxu0
    %v569 = vadd.f32 %v437, %v568
    %570 = vmatprep.mubr.f32.mxu0 0.0
    %571 = vmatmul.mubr.f32.gmra.mrb[0].mxu0 %v477
    %v572 = vpop.f32.mrb[0].mxu0
    %v573 = vadd.f32 %v442, %v572
    %v574 = vpop.f32.mrb[0].mxu0
    %v575 = vadd.f32 %v442, %v574
    %576 = vmatprep.mubr.f32.mxu0 0.0
    %577 = vmatmul.mubr.f32.gmra.mrb[0].mxu0 %v480
    %v578 = vpop.f32.mrb[0].mxu0
    %v579 = vadd.f32 %v447, %v578
    %v580 = vpop.f32.mrb[0].mxu0
    %v581 = vadd.f32 %v447, %v580
    %582 = vmatprep.mubr.f32.mxu0 0.0
    %583 = vmatmul.mubr.f32.gmra.mrb[0].mxu0 %v483
    %v584 = vpop.f32.mrb[0].mxu0
    %v585 = vadd.f32 %v452, %v584
    %v586 = vpop.f32.mrb[0].mxu0
    %v587 = vadd.f32 %v452, %v586
    %588 = vmatprep.mubr.f32.mxu0 0.0
    %589 = vmatmul.mubr.f32.gmra.mrb[0].mxu0 %v486
    %v590 = vpop.f32.mrb[0].mxu0
    %v591 = vadd.f32 %v457, %v590
    %v592 = vpop.f32.mrb[0].mxu0
    %v593 = vadd.f32 %v457, %v592
    %594 = vmatprep.mubr.f32.mxu0 0.0
    %595 = vmatmul.mubr.f32.gmra.mrb[0].mxu0 %v489
    %v596 = vpop.f32.mrb[0].mxu0
    %v597 = vadd.f32 %v462, %v596
    %v598 = vpop.f32.mrb[0].mxu0
    %v599 = vadd.f32 %v462, %v598
    %600 = vmatprep.mubr.f32.mxu0 0.0
    %601 = vmatmul.mubr.f32.gmra.mrb[0].mxu0 %v492
    %v602 = vpop.f32.mrb[0].mxu0
    %v603 = vadd.f32 %v467, %v602
    %v604 = vpop.f32.mrb[0].mxu0
    %v605 = vadd.f32 %v467, %v604
    %606 = vdwg.mxu0
    %607 = vmatprep.subr.mxu0 %v384
    %608 = vmatpush1.msra.mxu0 %v383
    %609 = vmatprep.subr.mxu0 %v388
    %610 = vmatpush1.msra.mxu0 %v387
    %611 = vmatprep.subr.mxu0 %v392
    %612 = vmatpush1.msra.mxu0 %v391
    %613 = vmatprep.subr.mxu0 %v396
    %614 = vmatpush1.msra.mxu0 %v395
    %615 = vmatprep.subr.mxu0 %v400
    %616 = vmatpush1.msra.mxu0 %v399
    %617 = vmatprep.subr.mxu0 %v404
    %618 = vmatpush1.msra.mxu0 %v403
    %619 = vmatprep.subr.mxu0 %v408
    %620 = vmatpush1.msra.mxu0 %v407
    %621 = vmatprep.subr.mxu0 %v412
    %622 = vmatpush1.msra.mxu0 %v411
    %623 = vmatprep.subr.mxu0 0.0
    %624 = vmatpush1.msra.mxu0 0.0
    %625 = vmatprep.subr.mxu0 0.0
    %626 = vmatpush1.msra.mxu0 0.0
    %627 = vmatprep.subr.mxu0 0.0
    %628 = vmatpush1.msra.mxu0 0.0
    %629 = vmatprep.subr.mxu0 0.0
    %630 = vmatpush1.msra.mxu0 0.0
    %631 = vmatprep.subr.mxu0 0.0
    %632 = vmatpush1.msra.mxu0 0.0
    %633 = vmatprep.subr.mxu0 0.0
    %634 = vmatpush1.msra.mxu0 0.0
    %635 = vmatprep.subr.mxu0 0.0
    %636 = vmatpush1.msra.mxu0 0.0
    %637 = vmatprep.subr.mxu0 0.0
    %638 = vmatpush1.msra.mxu0 0.0
    %639 = vmatprep.subr.mxu0 0.0
    %640 = vmatpush1.msra.mxu0 0.0
    %641 = vmatprep.subr.mxu0 0.0
    %642 = vmatpush1.msra.mxu0 0.0
    %643 = vmatprep.subr.mxu0 0.0
    %644 = vmatpush1.msra.mxu0 0.0
    %645 = vmatprep.subr.mxu0 0.0
    %646 = vmatpush1.msra.mxu0 0.0
    %647 = vmatprep.subr.mxu0 0.0
    %648 = vmatpush1.msra.mxu0 0.0
    %649 = vmatprep.subr.mxu0 0.0
    %650 = vmatpush1.msra.mxu0 0.0
    %651 = vmatprep.subr.mxu0 0.0
    %652 = vmatpush1.msra.mxu0 0.0
    %653 = vmatprep.subr.mxu0 0.0
    %654 = vmatpush1.msra.mxu0 0.0
    %655 = vmatprep.subr.mxu0 0.0
    %656 = vmatpush1.msra.mxu0 0.0
    %657 = vmatprep.subr.mxu0 0.0
    %658 = vmatpush1.msra.mxu0 0.0
    %659 = vmatprep.subr.mxu0 0.0
    %660 = vmatpush1.msra.mxu0 0.0
    %661 = vmatprep.subr.mxu0 0.0
    %662 = vmatpush1.msra.mxu0 0.0
    %663 = vmatprep.subr.mxu0 0.0
    %664 = vmatpush1.msra.mxu0 0.0
    %665 = vmatprep.subr.mxu0 0.0
    %666 = vmatpush1.msra.mxu0 0.0
    %667 = vmatprep.subr.mxu0 0.0
    %668 = vmatpush1.msra.mxu0 0.0
    %669 = vmatprep.subr.mxu0 0.0
    %670 = vmatpush1.msra.mxu0 0.0
    %671 = vmatprep.mubr.f32.mxu0 0.0
    %672 = vmatmul.mubr.f32.gmra.mrb[0].mxu0 %v471
    %v673 = vpop.f32.mrb[0].mxu0
    %v674 = vadd.f32 %v432, %v673
    %v675 = vpop.f32.mrb[0].mxu0
    %v676 = vadd.f32 %v432, %v675
    %677 = vmatprep.mubr.f32.mxu0 0.0
    %678 = vmatmul.mubr.f32.gmra.mrb[0].mxu0 %v474
    %v679 = vpop.f32.mrb[0].mxu0
    %v680 = vadd.f32 %v437, %v679
    %v681 = vpop.f32.mrb[0].mxu0
    %v682 = vadd.f32 %v437, %v681
    %683 = vmatprep.mubr.f32.mxu0 0.0
    %684 = vmatmul.mubr.f32.gmra.mrb[0].mxu0 %v477
    %v685 = vpop.f32.mrb[0].mxu0
    %v686 = vadd.f32 %v442, %v685
    %v687 = vpop.f32.mrb[0].mxu0
    %v688 = vadd.f32 %v442, %v687
    %689 = vmatprep.mubr.f32.mxu0 0.0
    %690 = vmatmul.mubr.f32.gmra.mrb[0].mxu0 %v480
    %v691 = vpop.f32.mrb[0].mxu0
    %v692 = vadd.f32 %v447, %v691
    %v693 = vpop.f32.mrb[0].mxu0
    %v694 = vadd.f32 %v447, %v693
    %695 = vmatprep.mubr.f32.mxu0 0.0
    %696 = vmatmul.mubr.f32.gmra.mrb[0].mxu0 %v483
    %v697 = vpop.f32.mrb[0].mxu0
    %v698 = vadd.f32 %v452, %v697
    %v699 = vpop.f32.mrb[0].mxu0
    %v700 = vadd.f32 %v452, %v699
    %701 = vmatprep.mubr.f32.mxu0 0.0
    %702 = vmatmul.mubr.f32.gmra.mrb[0].mxu0 %v486
    %v703 = vpop.f32.mrb[0].mxu0
    %v704 = vadd.f32 %v457, %v703
    %v705 = vpop.f32.mrb[0].mxu0
    %v706 = vadd.f32 %v457, %v705
    %707 = vmatprep.mubr.f32.mxu0 0.0
    %708 = vmatmul.mubr.f32.gmra.mrb[0].mxu0 %v489
    %v709 = vpop.f32.mrb[0].mxu0
    %v710 = vadd.f32 %v462, %v709
    %v711 = vpop.f32.mrb[0].mxu0
    %v712 = vadd.f32 %v462, %v711
    %713 = vmatprep.mubr.f32.mxu0 0.0
    %714 = vmatmul.mubr.f32.gmra.mrb[0].mxu0 %v492
    %v715 = vpop.f32.mrb[0].mxu0
    %v716 = vadd.f32 %v467, %v715
    %v717 = vpop.f32.mrb[0].mxu0
    %v718 = vadd.f32 %v467, %v717
    %719 = vdwg.mxu0
    %v720 = vmul.f32 %v561, 0.2
    %v721 = vmul.f32 %v563, 0.2
    %v722 = vmul.f32 %v674, 0.2
    %v723 = vmul.f32 %v676, 0.2
    %v724 = vmul.f32 %v567, 0.2
    %v725 = vmul.f32 %v569, 0.2
    %v726 = vmul.f32 %v680, 0.2
    %v727 = vmul.f32 %v682, 0.2
    %v728 = vmul.f32 %v573, 0.2
    %v729 = vmul.f32 %v575, 0.2
    %v730 = vmul.f32 %v686, 0.2
    %v731 = vmul.f32 %v688, 0.2
    %v732 = vmul.f32 %v579, 0.2
    %v733 = vmul.f32 %v581, 0.2
    %v734 = vmul.f32 %v692, 0.2
    %v735 = vmul.f32 %v694, 0.2
    %v736 = vmul.f32 %v585, 0.2
    %v737 = vmul.f32 %v587, 0.2
    %v738 = vmul.f32 %v698, 0.2
    %v739 = vmul.f32 %v700, 0.2
    %v740 = vmul.f32 %v591, 0.2
    %v741 = vmul.f32 %v593, 0.2
    %v742 = vmul.f32 %v704, 0.2
    %v743 = vmul.f32 %v706, 0.2
    %v744 = vmul.f32 %v597, 0.2
    %v745 = vmul.f32 %v599, 0.2
    %v746 = vmul.f32 %v710, 0.2
    %v747 = vmul.f32 %v712, 0.2
    %v748 = vmul.f32 %v603, 0.2
    %v749 = vmul.f32 %v605, 0.2
    %v750 = vmul.f32 %v716, 0.2
    %v751 = vmul.f32 %v718, 0.2
    %v752 = vmax.f32 %v561, %v720
    %v753 = vmax.f32 %v563, %v721
    %v754 = vmax.f32 %v674, %v722
    %v755 = vmax.f32 %v676, %v723
    %v756 = vmax.f32 %v567, %v724
    %v757 = vmax.f32 %v569, %v725
    %v758 = vmax.f32 %v680, %v726
    %v759 = vmax.f32 %v682, %v727
    %v760 = vmax.f32 %v573, %v728
    %v761 = vmax.f32 %v575, %v729
    %v762 = vmax.f32 %v686, %v730
    %v763 = vmax.f32 %v688, %v731
    %v764 = vmax.f32 %v579, %v732
    %v765 = vmax.f32 %v581, %v733
    %v766 = vmax.f32 %v692, %v734
    %v767 = vmax.f32 %v694, %v735
    %v768 = vmax.f32 %v585, %v736
    %v769 = vmax.f32 %v587, %v737
    %v770 = vmax.f32 %v698, %v738
    %v771 = vmax.f32 %v700, %v739
    %v772 = vmax.f32 %v591, %v740
    %v773 = vmax.f32 %v593, %v741
    %v774 = vmax.f32 %v704, %v742
    %v775 = vmax.f32 %v706, %v743
    %v776 = vmax.f32 %v597, %v744
    %v777 = vmax.f32 %v599, %v745
    %v778 = vmax.f32 %v710, %v746
    %v779 = vmax.f32 %v712, %v747
    %v780 = vmax.f32 %v603, %v748
    %v781 = vmax.f32 %v605, %v749
    %v782 = vmax.f32 %v716, %v750
    %v783 = vmax.f32 %v718, %v751
    %v784 = vld [vmem:[%s5] sm:$0xff]
    %v785 = vld [vmem:[%s5 + $0x8] sm:$0xff]
    %v786 = vld [vmem:[%s6] sm:$0xff]
    %v787 = vld [vmem:[%s6 + $0x8] sm:$0xff]
    %789 = vset.pattern.permute.xlu0 0
    %790 = vperm.xlu0 %789, %v786
    %v791 = vpop.permute.xlu0 %790
    %794 = vset.pattern.permute.xlu0 0
    %795 = vperm.xlu0 %794, %v787
    %v796 = vpop.permute.xlu0 %795
    %v799 = vsel %vm469, %v784, 0
    %v802 = vsel %vm469, %v785, 0
    %804 = vmatprep.subr.mxu0 %v753
    %805 = vmatpush1.msra.mxu0 %v752
    %806 = vmatprep.subr.mxu0 %v757
    %807 = vmatpush1.msra.mxu0 %v756
    %808 = vmatprep.subr.mxu0 %v761
    %809 = vmatpush1.msra.mxu0 %v760
    %810 = vmatprep.subr.mxu0 %v765
    %811 = vmatpush1.msra.mxu0 %v764
    %812 = vmatprep.subr.mxu0 %v769
    %813 = vmatpush1.msra.mxu0 %v768
    %814 = vmatprep.subr.mxu0 %v773
    %815 = vmatpush1.msra.mxu0 %v772
    %816 = vmatprep.subr.mxu0 %v777
    %817 = vmatpush1.msra.mxu0 %v776
    %818 = vmatprep.subr.mxu0 %v781
    %819 = vmatpush1.msra.mxu0 %v780
    %820 = vmatprep.subr.mxu0 0.0
    %821 = vmatpush1.msra.mxu0 0.0
    %822 = vmatprep.subr.mxu0 0.0
    %823 = vmatpush1.msra.mxu0 0.0
    %824 = vmatprep.subr.mxu0 0.0
    %825 = vmatpush1.msra.mxu0 0.0
    %826 = vmatprep.subr.mxu0 0.0
    %827 = vmatpush1.msra.mxu0 0.0
    %828 = vmatprep.subr.mxu0 0.0
    %829 = vmatpush1.msra.mxu0 0.0
    %830 = vmatprep.subr.mxu0 0.0
    %831 = vmatpush1.msra.mxu0 0.0
    %832 = vmatprep.subr.mxu0 0.0
    %833 = vmatpush1.msra.mxu0 0.0
    %834 = vmatprep.subr.mxu0 0.0
    %835 = vmatpush1.msra.mxu0 0.0
    %836 = vmatprep.subr.mxu0 0.0
    %837 = vmatpush1.msra.mxu0 0.0
    %838 = vmatprep.subr.mxu0 0.0
    %839 = vmatpush1.msra.mxu0 0.0
    %840 = vmatprep.subr.mxu0 0.0
    %841 = vmatpush1.msra.mxu0 0.0
    %842 = vmatprep.subr.mxu0 0.0
    %843 = vmatpush1.msra.mxu0 0.0
    %844 = vmatprep.subr.mxu0 0.0
    %845 = vmatpush1.msra.mxu0 0.0
    %846 = vmatprep.subr.mxu0 0.0
    %847 = vmatpush1.msra.mxu0 0.0
    %848 = vmatprep.subr.mxu0 0.0
    %849 = vmatpush1.msra.mxu0 0.0
    %850 = vmatprep.subr.mxu0 0.0
    %851 = vmatpush1.msra.mxu0 0.0
    %852 = vmatprep.subr.mxu0 0.0
    %853 = vmatpush1.msra.mxu0 0.0
    %854 = vmatprep.subr.mxu0 0.0
    %855 = vmatpush1.msra.mxu0 0.0
    %856 = vmatprep.subr.mxu0 0.0
    %857 = vmatpush1.msra.mxu0 0.0
    %858 = vmatprep.subr.mxu0 0.0
    %859 = vmatpush1.msra.mxu0 0.0
    %860 = vmatprep.subr.mxu0 0.0
    %861 = vmatpush1.msra.mxu0 0.0
    %862 = vmatprep.subr.mxu0 0.0
    %863 = vmatpush1.msra.mxu0 0.0
    %864 = vmatprep.subr.mxu0 0.0
    %865 = vmatpush1.msra.mxu0 0.0
    %866 = vmatprep.subr.mxu0 0.0
    %867 = vmatpush1.msra.mxu0 0.0
    %868 = vmatprep.mubr.f32.mxu0 0.0
    %869 = vmatmul.mubr.f32.gmra.mrb[0].mxu0 %v799
    %v870 = vpop.f32.mrb[0].mxu0
    %v871 = vadd.f32 %v791, %v870
    %v872 = vpop.f32.mrb[0].mxu0
    %v873 = vadd.f32 %v791, %v872
    %874 = vmatprep.mubr.f32.mxu0 0.0
    %875 = vmatmul.mubr.f32.gmra.mrb[0].mxu0 %v802
    %v876 = vpop.f32.mrb[0].mxu0
    %v877 = vadd.f32 %v796, %v876
    %v878 = vpop.f32.mrb[0].mxu0
    %v879 = vadd.f32 %v796, %v878
    %880 = vdwg.mxu0
    %881 = vmatprep.subr.mxu0 %v755
    %882 = vmatpush1.msra.mxu0 %v754
    %883 = vmatprep.subr.mxu0 %v759
    %884 = vmatpush1.msra.mxu0 %v758
    %885 = vmatprep.subr.mxu0 %v763
    %886 = vmatpush1.msra.mxu0 %v762
    %887 = vmatprep.subr.mxu0 %v767
    %888 = vmatpush1.msra.mxu0 %v766
    %889 = vmatprep.subr.mxu0 %v771
    %890 = vmatpush1.msra.mxu0 %v770
    %891 = vmatprep.subr.mxu0 %v775
    %892 = vmatpush1.msra.mxu0 %v774
    %893 = vmatprep.subr.mxu0 %v779
    %894 = vmatpush1.msra.mxu0 %v778
    %895 = vmatprep.subr.mxu0 %v783
    %896 = vmatpush1.msra.mxu0 %v782
    %897 = vmatprep.subr.mxu0 0.0
    %898 = vmatpush1.msra.mxu0 0.0
    %899 = vmatprep.subr.mxu0 0.0
    %900 = vmatpush1.msra.mxu0 0.0
    %901 = vmatprep.subr.mxu0 0.0
    %902 = vmatpush1.msra.mxu0 0.0
    %903 = vmatprep.subr.mxu0 0.0
    %904 = vmatpush1.msra.mxu0 0.0
    %905 = vmatprep.subr.mxu0 0.0
    %906 = vmatpush1.msra.mxu0 0.0
    %907 = vmatprep.subr.mxu0 0.0
    %908 = vmatpush1.msra.mxu0 0.0
    %909 = vmatprep.subr.mxu0 0.0
    %910 = vmatpush1.msra.mxu0 0.0
    %911 = vmatprep.subr.mxu0 0.0
    %912 = vmatpush1.msra.mxu0 0.0
    %913 = vmatprep.subr.mxu0 0.0
    %914 = vmatpush1.msra.mxu0 0.0
    %915 = vmatprep.subr.mxu0 0.0
    %916 = vmatpush1.msra.mxu0 0.0
    %917 = vmatprep.subr.mxu0 0.0
    %918 = vmatpush1.msra.mxu0 0.0
    %919 = vmatprep.subr.mxu0 0.0
    %920 = vmatpush1.msra.mxu0 0.0
    %921 = vmatprep.subr.mxu0 0.0
    %922 = vmatpush1.msra.mxu0 0.0
    %923 = vmatprep.subr.mxu0 0.0
    %924 = vmatpush1.msra.mxu0 0.0
    %925 = vmatprep.subr.mxu0 0.0
    %926 = vmatpush1.msra.mxu0 0.0
    %927 = vmatprep.subr.mxu0 0.0
    %928 = vmatpush1.msra.mxu0 0.0
    %929 = vmatprep.subr.mxu0 0.0
    %930 = vmatpush1.msra.mxu0 0.0
    %931 = vmatprep.subr.mxu0 0.0
    %932 = vmatpush1.msra.mxu0 0.0
    %933 = vmatprep.subr.mxu0 0.0
    %934 = vmatpush1.msra.mxu0 0.0
    %935 = vmatprep.subr.mxu0 0.0
    %936 = vmatpush1.msra.mxu0 0.0
    %937 = vmatprep.subr.mxu0 0.0
    %938 = vmatpush1.msra.mxu0 0.0
    %939 = vmatprep.subr.mxu0 0.0
    %940 = vmatpush1.msra.mxu0 0.0
    %941 = vmatprep.subr.mxu0 0.0
    %942 = vmatpush1.msra.mxu0 0.0
    %943 = vmatprep.subr.mxu0 0.0
    %944 = vmatpush1.msra.mxu0 0.0
    %945 = vmatprep.mubr.f32.mxu0 0.0
    %946 = vmatmul.mubr.f32.gmra.mrb[0].mxu0 %v799
    %v947 = vpop.f32.mrb[0].mxu0
    %v948 = vadd.f32 %v791, %v947
    %v949 = vpop.f32.mrb[0].mxu0
    %v950 = vadd.f32 %v791, %v949
    %951 = vmatprep.mubr.f32.mxu0 0.0
    %952 = vmatmul.mubr.f32.gmra.mrb[0].mxu0 %v802
    %v953 = vpop.f32.mrb[0].mxu0
    %v954 = vadd.f32 %v796, %v953
    %v955 = vpop.f32.mrb[0].mxu0
    %v956 = vadd.f32 %v796, %v955
    %957 = vdwg.mxu0
    %v958 = vmul.f32 %v871, 0.2
    %v959 = vmul.f32 %v873, 0.2
    %v960 = vmul.f32 %v948, 0.2
    %v961 = vmul.f32 %v950, 0.2
    %v962 = vmul.f32 %v877, 0.2
    %v963 = vmul.f32 %v879, 0.2
    %v964 = vmul.f32 %v954, 0.2
    %v965 = vmul.f32 %v956, 0.2
    %v966 = vmax.f32 %v871, %v958
    %v967 = vmax.f32 %v873, %v959
    %v968 = vmax.f32 %v948, %v960
    %v969 = vmax.f32 %v950, %v961
    %v970 = vmax.f32 %v877, %v962
    %v971 = vmax.f32 %v879, %v963
    %v972 = vmax.f32 %v954, %v964
    %v973 = vmax.f32 %v956, %v965
    %974 = vst [vmem:[#allocation2] sm:$0xff] %v966
    %975 = vst [vmem:[#allocation2 + $0x8] sm:$0xff] %v967
    %976 = vst [vmem:[#allocation2 + $0x10] sm:$0xff] %v968
    %977 = vst [vmem:[#allocation2 + $0x18] sm:$0xff] %v969
    %978 = vst [vmem:[#allocation2 + $0x20] sm:$0xff] %v970
    %979 = vst [vmem:[#allocation2 + $0x28] sm:$0xff] %v971
    %980 = vst [vmem:[#allocation2 + $0x30] sm:$0xff] %v972
    %981 = vst [vmem:[#allocation2 + $0x38] sm:$0xff] %v973
    // Predicated region
    $region30: #{tpu_custom_call.1} parent=1 // pred_check
      _
    $region31: #{tpu_custom_call.1} parent=1 // pred_check_branch
      %983 = sbr.rel (0) target = $region33
    $region32: #{tpu_custom_call.1} parent=1 // pred_region
      %s985 = ssub.s32 1024, 1024
      %986 = vsyncadd [#allocation3], %s985
      %s987 = sshll.u32 [#allocation2], 4
      %s988 = int_to_ptr.vmem [resolvable:$true] %s987
      %993 = dma.vmem_to_hbm [thread:$0]  %s988, 1024, %s7, [#allocation3], 512, 512, 32
    $region33: #{tpu_custom_call.1} parent=1 // pred_fallthru
      _
    // Predicated region
    $region34: #{tpu_custom_call.1} parent=1 // pred_check
      _
    $region35: #{tpu_custom_call.1} parent=1 // pred_check_branch
      %995 = sbr.rel (0) target = $region37
    $region36: #{tpu_custom_call.1} parent=1 // pred_region
      %996 = dma.done [#allocation3], 1024
    $region37: #{tpu_custom_call.1} parent=1 // pred_fallthru
      _
    %997 = vsyncpa [#allocation3], 1

</llo_original>
